<compile_context>
chip_gen: v5e
topology: v5e:2x2
jax: 0.10.0
libtpu: 0.0.40
codegen_flags: <defaults>
</compile_context>

<pallas_src>
import functools
import numpy as np
import jax
import jax.numpy as jnp
from jax.experimental import pallas as pl
from jax.experimental.pallas import tpu as pltpu

# ----- HybridLoss hyper-parameters (deterministic, set in-script) -----
N_FFTS = [64, 32]            # MSSLoss scales (small, demo-sized)
ALPHA = 1.0
OVERLAP = 0.75
EPS = 1e-7
RATIO = 1.0
REVERB_WEIGHT = 0.01         # ReverbRegularizer(weight=0.01, loss_type='L1')
L1_WEIGHT_OF_INHARM = 0.1
PHASE = False                # exercise the inharm-L1 branch

LANES = 128
# MXU-operand dtype.  bf16 roughly triples MXU throughput and halves HBM/VMEM
# traffic of the dominant framed-signal stream; |STFT|^2, the log term and the
# accumulation stay f32.  Use jnp.float32 for exact parity with PyTorch.
MATMUL_DTYPE = jnp.bfloat16


def _cdiv(a, b):
    return -(-a // b)


def _round_up(x, m):
    return _cdiv(x, m) * m


def _hw_config():
    """Per-generation layout/tiling knobs. Trace-time; safe on CPU/interpret."""
    kind = ""
    try:
        dev = jax.devices()[0]
        if dev.platform == "tpu":
            kind = (getattr(dev, "device_kind", "") or "").lower()
    except Exception:
        kind = ""
    is_v7 = "v7" in kind
    is_v6 = "v6" in kind
    return dict(
        nsplit=2 if is_v7 else 1,                    # 2nd TensorCore only on v7x
        k_target=256 if (is_v6 or is_v7) else 128,   # MXU K-depth (v5e / CPU: 128)
        tile_rows=2048 if is_v7 else 4096,           # v7x: 64 MiB VMEM; v5e/v6e: 128
        vmem_limit=(48 << 20) if is_v7 else (80 << 20),
    )


# ---------------------------------------------------------------------------
# Pallas kernel (single fused kernel for every loss term)
# ---------------------------------------------------------------------------
def _make_hybrid_kernel(ns, ws, alpha, eps, reverb_weight, ir_batch, l1w):
    """Builds the fused kernel for `ns` STFT scales.

    Ref layout (inputs then outputs):
      per scale: ft, fp, basis            (3*ns refs)
      ir, sl, of                          (3 refs)
      per scale: sss partial-sum output   (ns refs)
      rev, inh outputs                    (2 refs)
    """

    def kernel(*refs):
        ft_refs = refs[0:3 * ns:3]
        fp_refs = refs[1:3 * ns:3]
        b_refs = refs[2:3 * ns:3]
        ir_ref, sl_ref, of_ref = refs[3 * ns:3 * ns + 3]
        sss_refs = refs[3 * ns + 3:3 * ns + 3 + ns]
        rev_ref = refs[3 * ns + 3 + ns]
        inh_ref = refs[3 * ns + 4 + ns]

        step = pl.program_id(1)            # top-level only (interpret-safe)

        @pl.when(step == 0)
        def _init():
            for o_ref in sss_refs:
                o_ref[...] = jnp.zeros(o_ref.shape, o_ref.dtype)

        for ft_ref, fp_ref, b_ref, o_ref, w in zip(ft_refs, fp_refs, b_refs,
                                                   sss_refs, ws):
            basis = b_ref[...]             # (K, 2W): cos lanes [0,W), sin [W,2W)
            yt = jnp.dot(ft_ref[...], basis, preferred_element_type=jnp.float32)
            yp = jnp.dot(fp_ref[...], basis, preferred_element_type=jnp.float32)
            pt = yt * yt
            pp = yp * yp
            # |STFT|^2 = cos^2 + sin^2 via a 128-aligned lane split (W % 128 == 0)
            s_t = pt[:, :w] + pt[:, w:]
            s_p = pp[:, :w] + pp[:, w:]
            # fused L1 + alpha*logL1 density, single log2 via log-of-ratio
            d = jnp.abs(s_p - s_t) + alpha * jnp.abs(
                jnp.log2((s_t + eps) / (s_p + eps)))
            # lane-dense partial sum, accumulated in the resident output block
            o_ref[...] += jnp.sum(d, axis=0, keepdims=True).reshape(1, 1, -1)

        # Tiny aux regularizer terms: written (identically) on every grid step /
        # core into the core's own block; the wrapper reads core 0 only.
        rev = (reverb_weight / ir_batch) * jnp.sum(
            jnp.abs(ir_ref[...]), axis=0, keepdims=True)
        inh = l1w * (jnp.abs(sl_ref[...]) + jnp.abs(of_ref[...]))
        rev_ref[...] = rev.reshape(1, 1, -1)
        inh_ref[...] = inh.reshape(1, 1, -1)

    return kernel


# ---------------------------------------------------------------------------
# Glue: gather-free framing + cached packed windowed DFT bases
# ---------------------------------------------------------------------------
def _frame(x, n_fft, hop):
    """torch.stft(center=True, pad_mode='reflect') framing -> (B*n_frames, n_fft)."""
    b, length = x.shape
    pad = n_fft // 2
    xp = jnp.pad(x, ((0, 0), (pad, pad)), mode='reflect')
    n_frames = 1 + length // hop
    if n_fft % hop == 0:
        # gather-free: reshape into hop-sized chunks, concat shifted views
        rr = n_fft // hop
        n_chunk = n_frames - 1 + rr
        chunks = xp[:, :n_chunk * hop].reshape(b, n_chunk, hop)
        frames = jnp.concatenate(
            [chunks[:, j:j + n_frames, :] for j in range(rr)], axis=-1)
    else:  # fallback (not hit with overlap=0.75)
        idx = hop * jnp.arange(n_frames)[:, None] + jnp.arange(n_fft)[None, :]
        frames = xp[:, idx]
    return frames.reshape(b * n_frames, n_fft).astype(jnp.float32)


@functools.lru_cache(maxsize=None)
def _windowed_dft_basis_np(n_fft, r):
    """Hann-windowed one-sided DFT basis, block-diagonal over r packed frames.

    Returns (basis[r*n_fft, 2*W], W, nb) with frame j's cos bins in lanes
    [j*half, j*half+nb) of [0, W) and its sin bins in [W + j*half, ...).
    W = r*half is a multiple of 128 so the kernel's cos/sin split is aligned.
    """
    nb = n_fft // 2 + 1
    half = n_fft if r > 1 else _round_up(nb, LANES)
    w_tot = r * half
    n = np.arange(n_fft)
    win = 0.5 - 0.5 * np.cos(2.0 * np.pi * n / n_fft)   # periodic hann
    k = np.arange(nb)
    ang = 2.0 * np.pi * np.outer(n, k) / n_fft
    cosb = (win[:, None] * np.cos(ang)).astype(np.float32)
    sinb = (win[:, None] * np.sin(ang)).astype(np.float32)
    basis = np.zeros((r * n_fft, 2 * w_tot), dtype=np.float32)
    for j in range(r):
        basis[j * n_fft:(j + 1) * n_fft, j * half:j * half + nb] = cosb
        basis[j * n_fft:(j + 1) * n_fft,
              w_tot + j * half:w_tot + j * half + nb] = sinb
    return basis, w_tot, nb


def _pad_lanes(v, width):
    v = v.reshape(1, -1).astype(jnp.float32)
    return jnp.pad(v, ((0, 0), (0, width - v.shape[1])))


# ---------------------------------------------------------------------------
# Module-equivalent forward pass
# ---------------------------------------------------------------------------
@functools.partial(jax.jit, static_argnames=("phase", "tile_rows"))
def hybrid_loss(y_pred, y_true, reverb_ir, slopes_modifier, offsets_modifier,
                phase=PHASE, tile_rows=None):
    cfg = _hw_config()
    nsplit, k_target = cfg["nsplit"], cfg["k_target"]
    if tile_rows is None:
        tile_rows = cfg["tile_rows"]

    # MSSLoss trims pred to true length; SSSLoss then takes the common tail.
    y_pred = y_pred[..., :y_true.shape[-1]]
    min_len = min(y_true.shape[1], y_pred.shape[1])
    x_t = y_true[:, -min_len:]
    x_p = y_pred[:, -min_len:]
    batch = y_true.shape[0]

    hops = [int(n_fft * (1.0 - OVERLAP)) for n_fft in N_FFTS]
    n_frames = [1 + min_len // h for h in hops]
    m_true = [batch * nf for nf in n_frames]

    # K-packing factor per scale (frames per packed 128/256-lane row)
    packs = [k_target // n_fft if (k_target % n_fft == 0 and k_target >= n_fft)
             else 1 for n_fft in N_FFTS]
    m_rows = [_cdiv(m, r) for m, r in zip(m_true, packs)]

    # One shared (nsplit, g) grid; per-scale packed-row tile sizes.
    g = max(_cdiv(_cdiv(mr, nsplit), tile_rows) for mr in m_rows)
    tms = [_round_up(_cdiv(mr, nsplit * g), 8) for mr in m_rows]

    operands, in_specs, out_shape, out_specs = [], [], [], []
    ws, nbs = [], []
    for n_fft, hop, m, r, tm in zip(N_FFTS, hops, m_true, packs, tms):
        basis_np, w_tot, nb = _windowed_dft_basis_np(n_fft, r)
        ws.append(w_tot)
        nbs.append(nb)
        rows_pad = nsplit * g * tm
        frames_pad = rows_pad * r

        def pack(sig, _n=n_fft, _h=hop, _m=m, _r=r, _fp=frames_pad, _rp=rows_pad):
            fr = _frame(sig, _n, _h)                       # (m, n_fft) f32
            fr = jnp.pad(fr, ((0, _fp - _m), (0, 0)))      # zero frames are loss-neutral
            return fr.reshape(_rp, _r * _n).astype(MATMUL_DTYPE)

        ft = pack(x_t)
        fp = pack(x_p)
        basis = jnp.asarray(basis_np, dtype=MATMUL_DTYPE)

        operands += [ft, fp, basis]
        in_specs += [
            pl.BlockSpec((tm, r * n_fft), lambda c, i, _g=g: (c * _g + i, 0)),
            pl.BlockSpec((tm, r * n_fft), lambda c, i, _g=g: (c * _g + i, 0)),
            pl.BlockSpec(basis.shape, lambda c, i: (0, 0)),
        ]
        out_shape.append(jax.ShapeDtypeStruct((nsplit, 1, w_tot), jnp.float32))
        out_specs.append(pl.BlockSpec((1, 1, w_tot), lambda c, i: (c, 0, 0)))

    # Small regularizer inputs, padded lane-dense (zeros are |.|-neutral).
    ir_w = _round_up(reverb_ir.shape[1], LANES)
    ir = jnp.pad(reverb_ir.astype(jnp.float32),
                 ((0, 0), (0, ir_w - reverb_ir.shape[1])))
    w_sl = _round_up(max(slopes_modifier.size, offsets_modifier.size), LANES)
    sl = _pad_lanes(slopes_modifier, w_sl)
    of = _pad_lanes(offsets_modifier, w_sl)

    operands += [ir, sl, of]
    in_specs += [
        pl.BlockSpec(ir.shape, lambda c, i: (0, 0)),
        pl.BlockSpec(sl.shape, lambda c, i: (0, 0)),
        pl.BlockSpec(of.shape, lambda c, i: (0, 0)),
    ]
    out_shape += [jax.ShapeDtypeStruct((nsplit, 1, ir_w), jnp.float32),
                  jax.ShapeDtypeStruct((nsplit, 1, w_sl), jnp.float32)]
    out_specs += [pl.BlockSpec((1, 1, ir_w), lambda c, i: (c, 0, 0)),
                  pl.BlockSpec((1, 1, w_sl), lambda c, i: (c, 0, 0))]

    kernel = _make_hybrid_kernel(
        len(N_FFTS), tuple(ws), ALPHA, EPS, REVERB_WEIGHT,
        float(reverb_ir.shape[0]), L1_WEIGHT_OF_INHARM)

    results = pl.pallas_call(
        kernel,
        out_shape=out_shape,
        grid=(nsplit, g),
        in_specs=in_specs,
        out_specs=out_specs,
        compiler_params=pltpu.CompilerParams(
            dimension_semantics=("parallel", "arbitrary"),
            vmem_limit_bytes=cfg["vmem_limit"]),
    )(*operands)

    sss_parts = results[:len(N_FFTS)]
    rev_part = results[len(N_FFTS)]
    inh_part = results[len(N_FFTS) + 1]

    # Normalize by the TRUE element count (pad rows / pad lanes contribute 0;
    # no duplication factor since cos^2+sin^2 is formed by the aligned split).
    counts = [m * nb for m, nb in zip(m_true, nbs)]
    sss_losses = [jnp.sum(part) / cnt for part, cnt in zip(sss_parts, counts)]
    loss_mss = RATIO * sum(sss_losses)
    loss_reverb = jnp.sum(rev_part[0])        # core-0 block only (all identical)

    if phase:
        return loss_mss + loss_reverb, loss_mss, loss_reverb
    l1_penalty = jnp.sum(inh_part[0])
    return loss_mss + loss_reverb + l1_penalty, loss_mss, loss_reverb


# ---------------------------------------------------------------------------
if __name__ == "__main__":
    key = jax.random.PRNGKey(0)
    k1, k2, k3, k4, k5 = jax.random.split(key, 5)

    B, L = 2, 256            # (batch, 1d-wave)
    IR_LEN = 128             # reverb impulse response length
    N_KEYS = 88              # inharm slopes/offsets modifier size

    y_true = jax.random.normal(k1, (B, L), dtype=jnp.float32)
    y_pred = y_true + 0.1 * jax.random.normal(k2, (B, L), dtype=jnp.float32)
    reverb_ir = 0.01 * jax.random.normal(k3, (B, IR_LEN), dtype=jnp.float32)
    slopes_modifier = 0.001 * jax.random.normal(k4, (1, N_KEYS), dtype=jnp.float32)
    offsets_modifier = 0.001 * jax.random.normal(k5, (1, N_KEYS), dtype=jnp.float32)

    # small tile_rows so the demo exercises a real multi-step grid + accumulation
    total, loss_mss, loss_reverb = hybrid_loss(
        y_pred, y_true, reverb_ir, slopes_modifier, offsets_modifier,
        phase=PHASE, tile_rows=16)
    jax.block_until_ready((total, loss_mss, loss_reverb))
    print("KERNEL_OK")
</pallas_src>

<mosaic_0001>
module attributes {stable_mosaic.version = 11 : i64} {
  func.func @kernel(%arg0: i32, %arg1: i32, %arg2: memref<16x128xbf16, #tpu.memory_space<vmem>>, %arg3: memref<16x128xbf16, #tpu.memory_space<vmem>>, %arg4: memref<128x256xbf16, #tpu.memory_space<vmem>>, %arg5: memref<16x128xbf16, #tpu.memory_space<vmem>>, %arg6: memref<16x128xbf16, #tpu.memory_space<vmem>>, %arg7: memref<128x256xbf16, #tpu.memory_space<vmem>>, %arg8: memref<2x128xf32, #tpu.memory_space<vmem>>, %arg9: memref<1x128xf32, #tpu.memory_space<vmem>>, %arg10: memref<1x128xf32, #tpu.memory_space<vmem>>, %arg11: memref<1x1x128xf32, #tpu.memory_space<vmem>>, %arg12: memref<1x1x128xf32, #tpu.memory_space<vmem>>, %arg13: memref<1x1x128xf32, #tpu.memory_space<vmem>>, %arg14: memref<1x1x128xf32, #tpu.memory_space<vmem>>) attributes {dimension_semantics = [#tpu.dimension_semantics<parallel>, #tpu.dimension_semantics<arbitrary>], iteration_bounds = array<i64: 1, 2>, scalar_prefetch = 0 : i64, scratch_operands = 0 : i64, tpu.core_type = #tpu.core_type<tc>, window_params = [{transform_indices = @transform_0, window_bounds = array<i64: 16, 128>}, {transform_indices = @transform_1, window_bounds = array<i64: 16, 128>}, {pipeline_mode = #tpu.pipeline_mode<synchronous>, transform_indices = @transform_2, window_bounds = array<i64: 128, 256>}, {transform_indices = @transform_3, window_bounds = array<i64: 16, 128>}, {transform_indices = @transform_4, window_bounds = array<i64: 16, 128>}, {pipeline_mode = #tpu.pipeline_mode<synchronous>, transform_indices = @transform_5, window_bounds = array<i64: 128, 256>}, {pipeline_mode = #tpu.pipeline_mode<synchronous>, transform_indices = @transform_6, window_bounds = array<i64: 2, 128>}, {pipeline_mode = #tpu.pipeline_mode<synchronous>, transform_indices = @transform_7, window_bounds = array<i64: 1, 128>}, {pipeline_mode = #tpu.pipeline_mode<synchronous>, transform_indices = @transform_8, window_bounds = array<i64: 1, 128>}, {transform_indices = @transform_9, window_bounds = array<i64: 1, 1, 128>}, {transform_indices = @transform_10, window_bounds = array<i64: 1, 1, 128>}, {transform_indices = @transform_11, window_bounds = array<i64: 1, 1, 128>}, {transform_indices = @transform_12, window_bounds = array<i64: 1, 1, 128>}]} {
    %c0_i32 = arith.constant 0 : i32
    %0 = arith.cmpi eq, %arg1, %c0_i32 : i32
    %1 = arith.extui %0 : i1 to i32
    %c0_i32_0 = arith.constant 0 : i32
    %2 = arith.cmpi ne, %1, %c0_i32_0 : i32
    scf.if %2 {
      %cst_52 = arith.constant 0.000000e+00 : f32
      %88 = vector.broadcast %cst_52 : f32 to vector<1x1x128xf32>
      %c0_53 = arith.constant 0 : index
      %c0_54 = arith.constant 0 : index
      %c0_55 = arith.constant 0 : index
      %89 = vector.load %arg11[%c0_53, %c0_54, %c0_55] : memref<1x1x128xf32, #tpu.memory_space<vmem>>, vector<1x1x128xf32>
      tpu.vector_store %arg11[%c0_53, %c0_54, %c0_55], %88 {strides = array<i32>} : memref<1x1x128xf32, #tpu.memory_space<vmem>>, vector<1x1x128xf32>,
      %cst_56 = arith.constant 0.000000e+00 : f32
      %90 = vector.broadcast %cst_56 : f32 to vector<1x1x128xf32>
      %c0_57 = arith.constant 0 : index
      %c0_58 = arith.constant 0 : index
      %c0_59 = arith.constant 0 : index
      %91 = vector.load %arg12[%c0_57, %c0_58, %c0_59] : memref<1x1x128xf32, #tpu.memory_space<vmem>>, vector<1x1x128xf32>
      tpu.vector_store %arg12[%c0_57, %c0_58, %c0_59], %90 {strides = array<i32>} : memref<1x1x128xf32, #tpu.memory_space<vmem>>, vector<1x1x128xf32>,
    } else {
    }
    %c0 = arith.constant 0 : index
    %c0_1 = arith.constant 0 : index
    %3 = vector.load %arg4[%c0, %c0_1] : memref<128x256xbf16, #tpu.memory_space<vmem>>, vector<128x256xbf16>
    %c0_2 = arith.constant 0 : index
    %c0_3 = arith.constant 0 : index
    %4 = vector.load %arg2[%c0_2, %c0_3] : memref<16x128xbf16, #tpu.memory_space<vmem>>, vector<16x128xbf16>
    %cst = arith.constant dense<0.000000e+00> : vector<16x256xf32>
    %5 = tpu.matmul %4, %3, %cst {dimension_numbers = #tpu.dot_dimension_numbers<[1], [0], [0], [1], [0, 0, 1, 1], [], []>} : vector<16x128xbf16>, vector<128x256xbf16>, vector<16x256xf32> -> vector<16x256xf32>
    %c0_4 = arith.constant 0 : index
    %c0_5 = arith.constant 0 : index
    %6 = vector.load %arg3[%c0_4, %c0_5] : memref<16x128xbf16, #tpu.memory_space<vmem>>, vector<16x128xbf16>
    %cst_6 = arith.constant dense<0.000000e+00> : vector<16x256xf32>
    %7 = tpu.matmul %6, %3, %cst_6 {dimension_numbers = #tpu.dot_dimension_numbers<[1], [0], [0], [1], [0, 0, 1, 1], [], []>} : vector<16x128xbf16>, vector<128x256xbf16>, vector<16x256xf32> -> vector<16x256xf32>
    %8 = arith.mulf %5, %5 : vector<16x256xf32>
    %9 = arith.mulf %7, %7 : vector<16x256xf32>
    %10 = vector.extract_strided_slice %8 {offsets = [0, 0], sizes = [16, 128], strides = [1, 1]} : vector<16x256xf32> to vector<16x128xf32>
    %11 = vector.extract_strided_slice %8 {offsets = [0, 128], sizes = [16, 128], strides = [1, 1]} : vector<16x256xf32> to vector<16x128xf32>
    %12 = arith.addf %10, %11 : vector<16x128xf32>
    %13 = vector.extract_strided_slice %9 {offsets = [0, 0], sizes = [16, 128], strides = [1, 1]} : vector<16x256xf32> to vector<16x128xf32>
    %14 = vector.extract_strided_slice %9 {offsets = [0, 128], sizes = [16, 128], strides = [1, 1]} : vector<16x256xf32> to vector<16x128xf32>
    %15 = arith.addf %13, %14 : vector<16x128xf32>
    %16 = arith.subf %15, %12 : vector<16x128xf32>
    %17 = math.absf %16 : vector<16x128xf32>
    %cst_7 = arith.constant 1.000000e-07 : f32
    %18 = vector.broadcast %cst_7 : f32 to vector<16x128xf32>
    %19 = arith.addf %12, %18 : vector<16x128xf32>
    %cst_8 = arith.constant 1.000000e-07 : f32
    %20 = vector.broadcast %cst_8 : f32 to vector<16x128xf32>
    %21 = arith.addf %15, %20 : vector<16x128xf32>
    %22 = arith.divf %19, %21 : vector<16x128xf32>
    %23 = math.log %22 : vector<16x128xf32>
    %cst_9 = arith.constant 2.000000e+00 : f32
    %24 = math.log %cst_9 : f32
    %25 = vector.broadcast %24 : f32 to vector<16x128xf32>
    %26 = arith.divf %23, %25 : vector<16x128xf32>
    %27 = math.absf %26 : vector<16x128xf32>
    %cst_10 = arith.constant 1.000000e+00 : f32
    %28 = vector.broadcast %cst_10 : f32 to vector<16x128xf32>
    %29 = arith.mulf %28, %27 : vector<16x128xf32>
    %30 = arith.addf %17, %29 : vector<16x128xf32>
    %c0_11 = arith.constant 0 : index
    %c0_12 = arith.constant 0 : index
    %c0_13 = arith.constant 0 : index
    %31 = vector.load %arg11[%c0_11, %c0_12, %c0_13] : memref<1x1x128xf32, #tpu.memory_space<vmem>>, vector<1x1x128xf32>
    %cst_14 = arith.constant dense<0.000000e+00> : vector<128xf32>
    %32 = vector.multi_reduction <add>, %30, %cst_14 [0] : vector<16x128xf32> to vector<128xf32>
    %33 = vector.shape_cast %32 : vector<128xf32> to vector<1x128xf32>
    %34 = vector.shape_cast %33 : vector<1x128xf32> to vector<1x1x128xf32>
    %35 = arith.addf %31, %34 : vector<1x1x128xf32>
    %c0_15 = arith.constant 0 : index
    %c0_16 = arith.constant 0 : index
    %c0_17 = arith.constant 0 : index
    %36 = vector.load %arg11[%c0_15, %c0_16, %c0_17] : memref<1x1x128xf32, #tpu.memory_space<vmem>>, vector<1x1x128xf32>
    tpu.vector_store %arg11[%c0_15, %c0_16, %c0_17], %35 {strides = array<i32>} : memref<1x1x128xf32, #tpu.memory_space<vmem>>, vector<1x1x128xf32>,
    %c0_18 = arith.constant 0 : index
    %c0_19 = arith.constant 0 : index
    %37 = vector.load %arg7[%c0_18, %c0_19] : memref<128x256xbf16, #tpu.memory_space<vmem>>, vector<128x256xbf16>
    %c0_20 = arith.constant 0 : index
    %c0_21 = arith.constant 0 : index
    %38 = vector.load %arg5[%c0_20, %c0_21] : memref<16x128xbf16, #tpu.memory_space<vmem>>, vector<16x128xbf16>
    %cst_22 = arith.constant dense<0.000000e+00> : vector<16x256xf32>
    %39 = tpu.matmul %38, %37, %cst_22 {dimension_numbers = #tpu.dot_dimension_numbers<[1], [0], [0], [1], [0, 0, 1, 1], [], []>} : vector<16x128xbf16>, vector<128x256xbf16>, vector<16x256xf32> -> vector<16x256xf32>
    %c0_23 = arith.constant 0 : index
    %c0_24 = arith.constant 0 : index
    %40 = vector.load %arg6[%c0_23, %c0_24] : memref<16x128xbf16, #tpu.memory_space<vmem>>, vector<16x128xbf16>
    %cst_25 = arith.constant dense<0.000000e+00> : vector<16x256xf32>
    %41 = tpu.matmul %40, %37, %cst_25 {dimension_numbers = #tpu.dot_dimension_numbers<[1], [0], [0], [1], [0, 0, 1, 1], [], []>} : vector<16x128xbf16>, vector<128x256xbf16>, vector<16x256xf32> -> vector<16x256xf32>
    %42 = arith.mulf %39, %39 : vector<16x256xf32>
    %43 = arith.mulf %41, %41 : vector<16x256xf32>
    %44 = vector.extract_strided_slice %42 {offsets = [0, 0], sizes = [16, 128], strides = [1, 1]} : vector<16x256xf32> to vector<16x128xf32>
    %45 = vector.extract_strided_slice %42 {offsets = [0, 128], sizes = [16, 128], strides = [1, 1]} : vector<16x256xf32> to vector<16x128xf32>
    %46 = arith.addf %44, %45 : vector<16x128xf32>
    %47 = vector.extract_strided_slice %43 {offsets = [0, 0], sizes = [16, 128], strides = [1, 1]} : vector<16x256xf32> to vector<16x128xf32>
    %48 = vector.extract_strided_slice %43 {offsets = [0, 128], sizes = [16, 128], strides = [1, 1]} : vector<16x256xf32> to vector<16x128xf32>
    %49 = arith.addf %47, %48 : vector<16x128xf32>
    %50 = arith.subf %49, %46 : vector<16x128xf32>
    %51 = math.absf %50 : vector<16x128xf32>
    %cst_26 = arith.constant 1.000000e-07 : f32
    %52 = vector.broadcast %cst_26 : f32 to vector<16x128xf32>
    %53 = arith.addf %46, %52 : vector<16x128xf32>
    %cst_27 = arith.constant 1.000000e-07 : f32
    %54 = vector.broadcast %cst_27 : f32 to vector<16x128xf32>
    %55 = arith.addf %49, %54 : vector<16x128xf32>
    %56 = arith.divf %53, %55 : vector<16x128xf32>
    %57 = math.log %56 : vector<16x128xf32>
    %cst_28 = arith.constant 2.000000e+00 : f32
    %58 = math.log %cst_28 : f32
    %59 = vector.broadcast %58 : f32 to vector<16x128xf32>
    %60 = arith.divf %57, %59 : vector<16x128xf32>
    %61 = math.absf %60 : vector<16x128xf32>
    %cst_29 = arith.constant 1.000000e+00 : f32
    %62 = vector.broadcast %cst_29 : f32 to vector<16x128xf32>
    %63 = arith.mulf %62, %61 : vector<16x128xf32>
    %64 = arith.addf %51, %63 : vector<16x128xf32>
    %c0_30 = arith.constant 0 : index
    %c0_31 = arith.constant 0 : index
    %c0_32 = arith.constant 0 : index
    %65 = vector.load %arg12[%c0_30, %c0_31, %c0_32] : memref<1x1x128xf32, #tpu.memory_space<vmem>>, vector<1x1x128xf32>
    %cst_33 = arith.constant dense<0.000000e+00> : vector<128xf32>
    %66 = vector.multi_reduction <add>, %64, %cst_33 [0] : vector<16x128xf32> to vector<128xf32>
    %67 = vector.shape_cast %66 : vector<128xf32> to vector<1x128xf32>
    %68 = vector.shape_cast %67 : vector<1x128xf32> to vector<1x1x128xf32>
    %69 = arith.addf %65, %68 : vector<1x1x128xf32>
    %c0_34 = arith.constant 0 : index
    %c0_35 = arith.constant 0 : index
    %c0_36 = arith.constant 0 : index
    %70 = vector.load %arg12[%c0_34, %c0_35, %c0_36] : memref<1x1x128xf32, #tpu.memory_space<vmem>>, vector<1x1x128xf32>
    tpu.vector_store %arg12[%c0_34, %c0_35, %c0_36], %69 {strides = array<i32>} : memref<1x1x128xf32, #tpu.memory_space<vmem>>, vector<1x1x128xf32>,
    %c0_37 = arith.constant 0 : index
    %c0_38 = arith.constant 0 : index
    %71 = vector.load %arg8[%c0_37, %c0_38] : memref<2x128xf32, #tpu.memory_space<vmem>>, vector<2x128xf32>
    %72 = math.absf %71 : vector<2x128xf32>
    %cst_39 = arith.constant dense<0.000000e+00> : vector<128xf32>
    %73 = vector.multi_reduction <add>, %72, %cst_39 [0] : vector<2x128xf32> to vector<128xf32>
    %74 = vector.shape_cast %73 : vector<128xf32> to vector<1x128xf32>
    %cst_40 = arith.constant 5.000000e-03 : f32
    %75 = vector.broadcast %cst_40 : f32 to vector<1x128xf32>
    %76 = arith.mulf %75, %74 : vector<1x128xf32>
    %c0_41 = arith.constant 0 : index
    %c0_42 = arith.constant 0 : index
    %77 = vector.load %arg9[%c0_41, %c0_42] : memref<1x128xf32, #tpu.memory_space<vmem>>, vector<1x128xf32>
    %78 = math.absf %77 : vector<1x128xf32>
    %c0_43 = arith.constant 0 : index
    %c0_44 = arith.constant 0 : index
    %79 = vector.load %arg10[%c0_43, %c0_44] : memref<1x128xf32, #tpu.memory_space<vmem>>, vector<1x128xf32>
    %80 = math.absf %79 : vector<1x128xf32>
    %81 = arith.addf %78, %80 : vector<1x128xf32>
    %cst_45 = arith.constant 1.000000e-01 : f32
    %82 = vector.broadcast %cst_45 : f32 to vector<1x128xf32>
    %83 = arith.mulf %82, %81 : vector<1x128xf32>
    %84 = vector.shape_cast %76 : vector<1x128xf32> to vector<1x1x128xf32>
    %c0_46 = arith.constant 0 : index
    %c0_47 = arith.constant 0 : index
    %c0_48 = arith.constant 0 : index
    %85 = vector.load %arg13[%c0_46, %c0_47, %c0_48] : memref<1x1x128xf32, #tpu.memory_space<vmem>>, vector<1x1x128xf32>
    tpu.vector_store %arg13[%c0_46, %c0_47, %c0_48], %84 {strides = array<i32>} : memref<1x1x128xf32, #tpu.memory_space<vmem>>, vector<1x1x128xf32>,
    %86 = vector.shape_cast %83 : vector<1x128xf32> to vector<1x1x128xf32>
    %c0_49 = arith.constant 0 : index
    %c0_50 = arith.constant 0 : index
    %c0_51 = arith.constant 0 : index
    %87 = vector.load %arg14[%c0_49, %c0_50, %c0_51] : memref<1x1x128xf32, #tpu.memory_space<vmem>>, vector<1x1x128xf32>
    tpu.vector_store %arg14[%c0_49, %c0_50, %c0_51], %86 {strides = array<i32>} : memref<1x1x128xf32, #tpu.memory_space<vmem>>, vector<1x1x128xf32>,
    return
  }
  func.func @transform_0(%arg0: i32, %arg1: i32) -> (i32, i32) {
    %c2_i32 = arith.constant 2 : i32
    %0 = arith.muli %arg0, %c2_i32 : i32
    %1 = arith.addi %0, %arg1 : i32
    %c0_i32 = arith.constant 0 : i32
    %c0_i32_0 = arith.constant 0 : i32
    return %1, %c0_i32 : i32, i32
  }
  func.func @transform_1(%arg0: i32, %arg1: i32) -> (i32, i32) {
    %c2_i32 = arith.constant 2 : i32
    %0 = arith.muli %arg0, %c2_i32 : i32
    %1 = arith.addi %0, %arg1 : i32
    %c0_i32 = arith.constant 0 : i32
    %c0_i32_0 = arith.constant 0 : i32
    return %1, %c0_i32 : i32, i32
  }
  func.func @transform_2(%arg0: i32, %arg1: i32) -> (i32, i32) {
    %c0_i32 = arith.constant 0 : i32
    %c0_i32_0 = arith.constant 0 : i32
    %c0_i32_1 = arith.constant 0 : i32
    return %c0_i32, %c0_i32_0 : i32, i32
  }
  func.func @transform_3(%arg0: i32, %arg1: i32) -> (i32, i32) {
    %c2_i32 = arith.constant 2 : i32
    %0 = arith.muli %arg0, %c2_i32 : i32
    %1 = arith.addi %0, %arg1 : i32
    %c0_i32 = arith.constant 0 : i32
    %c0_i32_0 = arith.constant 0 : i32
    return %1, %c0_i32 : i32, i32
  }
  func.func @transform_4(%arg0: i32, %arg1: i32) -> (i32, i32) {
    %c2_i32 = arith.constant 2 : i32
    %0 = arith.muli %arg0, %c2_i32 : i32
    %1 = arith.addi %0, %arg1 : i32
    %c0_i32 = arith.constant 0 : i32
    %c0_i32_0 = arith.constant 0 : i32
    return %1, %c0_i32 : i32, i32
  }
  func.func @transform_5(%arg0: i32, %arg1: i32) -> (i32, i32) {
    %c0_i32 = arith.constant 0 : i32
    %c0_i32_0 = arith.constant 0 : i32
    %c0_i32_1 = arith.constant 0 : i32
    return %c0_i32, %c0_i32_0 : i32, i32
  }
  func.func @transform_6(%arg0: i32, %arg1: i32) -> (i32, i32) {
    %c0_i32 = arith.constant 0 : i32
    %c0_i32_0 = arith.constant 0 : i32
    %c0_i32_1 = arith.constant 0 : i32
    return %c0_i32, %c0_i32_0 : i32, i32
  }
  func.func @transform_7(%arg0: i32, %arg1: i32) -> (i32, i32) {
    %c0_i32 = arith.constant 0 : i32
    %c0_i32_0 = arith.constant 0 : i32
    %c0_i32_1 = arith.constant 0 : i32
    return %c0_i32, %c0_i32_0 : i32, i32
  }
  func.func @transform_8(%arg0: i32, %arg1: i32) -> (i32, i32) {
    %c0_i32 = arith.constant 0 : i32
    %c0_i32_0 = arith.constant 0 : i32
    %c0_i32_1 = arith.constant 0 : i32
    return %c0_i32, %c0_i32_0 : i32, i32
  }
  func.func @transform_9(%arg0: i32, %arg1: i32) -> (i32, i32, i32) {
    %c0_i32 = arith.constant 0 : i32
    %c0_i32_0 = arith.constant 0 : i32
    %c0_i32_1 = arith.constant 0 : i32
    return %arg0, %c0_i32, %c0_i32_0 : i32, i32, i32
  }
  func.func @transform_10(%arg0: i32, %arg1: i32) -> (i32, i32, i32) {
    %c0_i32 = arith.constant 0 : i32
    %c0_i32_0 = arith.constant 0 : i32
    %c0_i32_1 = arith.constant 0 : i32
    return %arg0, %c0_i32, %c0_i32_0 : i32, i32, i32
  }
  func.func @transform_11(%arg0: i32, %arg1: i32) -> (i32, i32, i32) {
    %c0_i32 = arith.constant 0 : i32
    %c0_i32_0 = arith.constant 0 : i32
    %c0_i32_1 = arith.constant 0 : i32
    return %arg0, %c0_i32, %c0_i32_0 : i32, i32, i32
  }
  func.func @transform_12(%arg0: i32, %arg1: i32) -> (i32, i32, i32) {
    %c0_i32 = arith.constant 0 : i32
    %c0_i32_0 = arith.constant 0 : i32
    %c0_i32_1 = arith.constant 0 : i32
    return %arg0, %c0_i32, %c0_i32_0 : i32, i32, i32
  }
}

</mosaic_0001>

<llo_original>
// kernel: hybrid_loss.1
$region0: #{hybrid_loss.1}
  #allocation0 [shape = 'u32[]', space=smem, size = 0x4, offset = 0x4, fixed_abs, tag = 'smem constant byte address 0x4 - core index']
  #allocation1 [shape = 'u32[72,128]{1,0:T(1,128)}', space=vmem, size = 0x9000, scoped, tag = 'internal scratch']
  %s0 = inlined_call_operand.vmem [shape: bf16[32,128], index: 0, kind: input, shape index: {}]
  %s1 = inlined_call_operand.vmem [shape: bf16[32,128], index: 1, kind: input, shape index: {}]
  %s2 = inlined_call_operand.vmem [shape: bf16[128,256], index: 2, kind: input, shape index: {}]
  %s3 = inlined_call_operand.vmem [shape: bf16[32,128], index: 3, kind: input, shape index: {}]
  %s4 = inlined_call_operand.vmem [shape: bf16[32,128], index: 4, kind: input, shape index: {}]
  %s5 = inlined_call_operand.vmem [shape: bf16[128,256], index: 5, kind: input, shape index: {}]
  %s6 = inlined_call_operand.vmem [shape: f32[2,128], index: 6, kind: input, shape index: {}]
  %s7 = inlined_call_operand.vmem [shape: f32[1,128], index: 7, kind: input, shape index: {}]
  %s8 = inlined_call_operand.vmem [shape: f32[1,128], index: 8, kind: input, shape index: {}]
  %s9 = inlined_call_operand.vmem [shape: f32[1,1,128], index: 9, kind: output, shape index: {0}]
  %s10 = inlined_call_operand.vmem [shape: f32[1,1,128], index: 10, kind: output, shape index: {1}]
  %s11 = inlined_call_operand.vmem [shape: f32[1,1,128], index: 11, kind: output, shape index: {2}]
  %s12 = inlined_call_operand.vmem [shape: f32[1,1,128], index: 12, kind: output, shape index: {3}]
  %13 = xla_tuple %s9, %s10, %s11, %s12
  %s14 = sld [smem:[#allocation0]]
  $region97: #{hybrid_loss.1} parent=0
    _
  %s16 = ssub.s32 1, %s14
  %s17 = scalar_select 0, %s16, %s14
  loop: start=0, step=1, limit=4
  $region2: #{hybrid_loss.1} parent=0 // loop_pre_header
    _
  $region3: #{hybrid_loss.1} parent=0 // loop_header
    %s19 = sphi 0, %s23
    %p20 = scmp.ge.s32.totalorder %s19, 4
    %s26 = sphi 0, %s38
    %s27 = sphi 0, %s34
    %s28 = sphi 0, %s26
    %s29 = sphi 0, %s27
    %s30 = sphi 0, %s28
    %s31 = sphi 0, %s29
    %s45 = sphi 0, %s47
    %s48 = sphi 0, %s45
    %s49 = sphi 0, %s48
    %s65 = sphi 0, %s49
    %s75 = sphi 0, %s77
    %s78 = sphi 0, %s75
    %s79 = sphi 0, %s78
    %s95 = sphi 0, %s79
    %s99 = sphi 0, %s99
    %s101 = sphi 0, %s99
    %s102 = sphi 0, %s101
    %s116 = sphi 0, %s102
    %s126 = sphi 0, %s128
    %s129 = sphi 0, %s126
    %s130 = sphi 0, %s129
    %s146 = sphi 0, %s130
    %s156 = sphi 0, %s158
    %s159 = sphi 0, %s156
    %s160 = sphi 0, %s159
    %s176 = sphi 0, %s160
    %s180 = sphi 0, %s180
    %s182 = sphi 0, %s180
    %s183 = sphi 0, %s182
    %s197 = sphi 0, %s183
    %s201 = sphi 0, %s201
    %s203 = sphi 0, %s201
    %s204 = sphi 0, %s203
    %s218 = sphi 0, %s204
    %s222 = sphi 0, %s222
    %s224 = sphi 0, %s222
    %s225 = sphi 0, %s224
    %s239 = sphi 0, %s225
    %s243 = sphi 0, %s243
    %s245 = sphi 0, %s243
    %s246 = sphi 0, %s245
    %s260 = sphi 0, %s246
    %s266 = sphi 0, %s268
    %s269 = sphi 0, %s266
    %s270 = sphi 0, %s269
    %s286 = sphi 0, %s270
    %s292 = sphi 0, %s294
    %s295 = sphi 0, %s292
    %s296 = sphi 0, %s295
    %s312 = sphi 0, %s296
    %s318 = sphi 0, %s320
    %s321 = sphi 0, %s318
    %s322 = sphi 0, %s321
    %s338 = sphi 0, %s322
    %s344 = sphi 0, %s346
    %s347 = sphi 0, %s344
    %s348 = sphi 0, %s347
    %s364 = sphi 0, %s348
  $region4: #{hybrid_loss.1} parent=0 // loop_header_branch
    %22 = sbr.rel (%p20) target = $region8
  $region5: #{hybrid_loss.1} parent=0 // loop_body
    %s24 = ssub.s32 %s19, 1
    %s25 = ssub.s32 %s19, 2
    %s32 = sadd.s32 1, %s27
    %p33 = scmp.ge.s32.totalorder %s32, 2
    %s34 = scalar_select %p33, 0, %s32
    %s35 = sadd.s32 1, %s26
    %s36 = scalar_select %p33, %s35, %s26
    %p37 = scmp.ge.s32.totalorder %s36, 1
    %s38 = scalar_select %p37, 0, %s36
    %s39 = smul.u32 %s26, 2
    %s40 = sadd.s32 %s39, %s27
    %s41 = smul.u32 %s38, 2
    %s42 = sadd.s32 %s41, %s34
    %s43 = ssub.s32 %s40, %s42
    %p44 = scmp.eq.s32.totalorder %s43, 0
    %s46 = sadd.s32 %s45, 1
    %s47 = scalar_select %p44, %s45, %s46
    %p50 = pneg %p44
    %p51 = scmp.eq.s32.totalorder %s19, 1
    %p52 = por %p50, %p51
    %p53 = scmp.ne.s32.totalorder %s45, %s48
    %p54 = scmp.eq.s32.totalorder %s19, 0
    %p55 = por %p53, %p54
    %p56 = scmp.ne.s32.totalorder %s45, %s48
    %p57 = scmp.eq.s32.totalorder %s24, 1
    %p58 = por %p56, %p57
    %p59 = scmp.ne.s32.totalorder %s48, %s49
    %p60 = scmp.eq.s32.totalorder %s24, 0
    %p61 = por %p59, %p60
    %p62 = scmp.ne.s32.totalorder %s48, %s49
    %p63 = scmp.eq.s32.totalorder %s25, 1
    %p64 = por %p62, %p63
    %p66 = scmp.ne.s32.totalorder %s49, %s65
    %p67 = scmp.eq.s32.totalorder %s25, 0
    %p68 = por %p66, %p67
    %s69 = smul.u32 %s26, 2
    %s70 = sadd.s32 %s69, %s27
    %s71 = smul.u32 %s38, 2
    %s72 = sadd.s32 %s71, %s34
    %s73 = ssub.s32 %s70, %s72
    %p74 = scmp.eq.s32.totalorder %s73, 0
    %s76 = sadd.s32 %s75, 1
    %s77 = scalar_select %p74, %s75, %s76
    %p80 = pneg %p74
    %p81 = scmp.eq.s32.totalorder %s19, 1
    %p82 = por %p80, %p81
    %p83 = scmp.ne.s32.totalorder %s75, %s78
    %p84 = scmp.eq.s32.totalorder %s19, 0
    %p85 = por %p83, %p84
    %p86 = scmp.ne.s32.totalorder %s75, %s78
    %p87 = scmp.eq.s32.totalorder %s24, 1
    %p88 = por %p86, %p87
    %p89 = scmp.ne.s32.totalorder %s78, %s79
    %p90 = scmp.eq.s32.totalorder %s24, 0
    %p91 = por %p89, %p90
    %p92 = scmp.ne.s32.totalorder %s78, %s79
    %p93 = scmp.eq.s32.totalorder %s25, 1
    %p94 = por %p92, %p93
    %p96 = scmp.ne.s32.totalorder %s79, %s95
    %p97 = scmp.eq.s32.totalorder %s25, 0
    %p98 = por %p96, %p97
    %s100 = sadd.s32 %s99, 1
    %p103 = scmp.eq.s32.totalorder %s19, 1
    %p104 = scmp.ne.s32.totalorder %s99, %s101
    %p105 = scmp.eq.s32.totalorder %s19, 0
    %p106 = por %p104, %p105
    %p107 = scmp.ne.s32.totalorder %s99, %s101
    %p108 = scmp.eq.s32.totalorder %s24, 1
    %p109 = por %p107, %p108
    %p110 = scmp.ne.s32.totalorder %s101, %s102
    %p111 = scmp.eq.s32.totalorder %s24, 0
    %p112 = por %p110, %p111
    %p113 = scmp.ne.s32.totalorder %s101, %s102
    %p114 = scmp.eq.s32.totalorder %s25, 1
    %p115 = por %p113, %p114
    %p117 = scmp.ne.s32.totalorder %s102, %s116
    %p118 = scmp.eq.s32.totalorder %s25, 0
    %p119 = por %p117, %p118
    %s120 = smul.u32 %s26, 2
    %s121 = sadd.s32 %s120, %s27
    %s122 = smul.u32 %s38, 2
    %s123 = sadd.s32 %s122, %s34
    %s124 = ssub.s32 %s121, %s123
    %p125 = scmp.eq.s32.totalorder %s124, 0
    %s127 = sadd.s32 %s126, 1
    %s128 = scalar_select %p125, %s126, %s127
    %p131 = pneg %p125
    %p132 = scmp.eq.s32.totalorder %s19, 1
    %p133 = por %p131, %p132
    %p134 = scmp.ne.s32.totalorder %s126, %s129
    %p135 = scmp.eq.s32.totalorder %s19, 0
    %p136 = por %p134, %p135
    %p137 = scmp.ne.s32.totalorder %s126, %s129
    %p138 = scmp.eq.s32.totalorder %s24, 1
    %p139 = por %p137, %p138
    %p140 = scmp.ne.s32.totalorder %s129, %s130
    %p141 = scmp.eq.s32.totalorder %s24, 0
    %p142 = por %p140, %p141
    %p143 = scmp.ne.s32.totalorder %s129, %s130
    %p144 = scmp.eq.s32.totalorder %s25, 1
    %p145 = por %p143, %p144
    %p147 = scmp.ne.s32.totalorder %s130, %s146
    %p148 = scmp.eq.s32.totalorder %s25, 0
    %p149 = por %p147, %p148
    %s150 = smul.u32 %s26, 2
    %s151 = sadd.s32 %s150, %s27
    %s152 = smul.u32 %s38, 2
    %s153 = sadd.s32 %s152, %s34
    %s154 = ssub.s32 %s151, %s153
    %p155 = scmp.eq.s32.totalorder %s154, 0
    %s157 = sadd.s32 %s156, 1
    %s158 = scalar_select %p155, %s156, %s157
    %p161 = pneg %p155
    %p162 = scmp.eq.s32.totalorder %s19, 1
    %p163 = por %p161, %p162
    %p164 = scmp.ne.s32.totalorder %s156, %s159
    %p165 = scmp.eq.s32.totalorder %s19, 0
    %p166 = por %p164, %p165
    %p167 = scmp.ne.s32.totalorder %s156, %s159
    %p168 = scmp.eq.s32.totalorder %s24, 1
    %p169 = por %p167, %p168
    %p170 = scmp.ne.s32.totalorder %s159, %s160
    %p171 = scmp.eq.s32.totalorder %s24, 0
    %p172 = por %p170, %p171
    %p173 = scmp.ne.s32.totalorder %s159, %s160
    %p174 = scmp.eq.s32.totalorder %s25, 1
    %p175 = por %p173, %p174
    %p177 = scmp.ne.s32.totalorder %s160, %s176
    %p178 = scmp.eq.s32.totalorder %s25, 0
    %p179 = por %p177, %p178
    %s181 = sadd.s32 %s180, 1
    %p184 = scmp.eq.s32.totalorder %s19, 1
    %p185 = scmp.ne.s32.totalorder %s180, %s182
    %p186 = scmp.eq.s32.totalorder %s19, 0
    %p187 = por %p185, %p186
    %p188 = scmp.ne.s32.totalorder %s180, %s182
    %p189 = scmp.eq.s32.totalorder %s24, 1
    %p190 = por %p188, %p189
    %p191 = scmp.ne.s32.totalorder %s182, %s183
    %p192 = scmp.eq.s32.totalorder %s24, 0
    %p193 = por %p191, %p192
    %p194 = scmp.ne.s32.totalorder %s182, %s183
    %p195 = scmp.eq.s32.totalorder %s25, 1
    %p196 = por %p194, %p195
    %p198 = scmp.ne.s32.totalorder %s183, %s197
    %p199 = scmp.eq.s32.totalorder %s25, 0
    %p200 = por %p198, %p199
    %s202 = sadd.s32 %s201, 1
    %p205 = scmp.eq.s32.totalorder %s19, 1
    %p206 = scmp.ne.s32.totalorder %s201, %s203
    %p207 = scmp.eq.s32.totalorder %s19, 0
    %p208 = por %p206, %p207
    %p209 = scmp.ne.s32.totalorder %s201, %s203
    %p210 = scmp.eq.s32.totalorder %s24, 1
    %p211 = por %p209, %p210
    %p212 = scmp.ne.s32.totalorder %s203, %s204
    %p213 = scmp.eq.s32.totalorder %s24, 0
    %p214 = por %p212, %p213
    %p215 = scmp.ne.s32.totalorder %s203, %s204
    %p216 = scmp.eq.s32.totalorder %s25, 1
    %p217 = por %p215, %p216
    %p219 = scmp.ne.s32.totalorder %s204, %s218
    %p220 = scmp.eq.s32.totalorder %s25, 0
    %p221 = por %p219, %p220
    %s223 = sadd.s32 %s222, 1
    %p226 = scmp.eq.s32.totalorder %s19, 1
    %p227 = scmp.ne.s32.totalorder %s222, %s224
    %p228 = scmp.eq.s32.totalorder %s19, 0
    %p229 = por %p227, %p228
    %p230 = scmp.ne.s32.totalorder %s222, %s224
    %p231 = scmp.eq.s32.totalorder %s24, 1
    %p232 = por %p230, %p231
    %p233 = scmp.ne.s32.totalorder %s224, %s225
    %p234 = scmp.eq.s32.totalorder %s24, 0
    %p235 = por %p233, %p234
    %p236 = scmp.ne.s32.totalorder %s224, %s225
    %p237 = scmp.eq.s32.totalorder %s25, 1
    %p238 = por %p236, %p237
    %p240 = scmp.ne.s32.totalorder %s225, %s239
    %p241 = scmp.eq.s32.totalorder %s25, 0
    %p242 = por %p240, %p241
    %s244 = sadd.s32 %s243, 1
    %p247 = scmp.eq.s32.totalorder %s19, 1
    %p248 = scmp.ne.s32.totalorder %s243, %s245
    %p249 = scmp.eq.s32.totalorder %s19, 0
    %p250 = por %p248, %p249
    %p251 = scmp.ne.s32.totalorder %s243, %s245
    %p252 = scmp.eq.s32.totalorder %s24, 1
    %p253 = por %p251, %p252
    %p254 = scmp.ne.s32.totalorder %s245, %s246
    %p255 = scmp.eq.s32.totalorder %s24, 0
    %p256 = por %p254, %p255
    %p257 = scmp.ne.s32.totalorder %s245, %s246
    %p258 = scmp.eq.s32.totalorder %s25, 1
    %p259 = por %p257, %p258
    %p261 = scmp.ne.s32.totalorder %s246, %s260
    %p262 = scmp.eq.s32.totalorder %s25, 0
    %p263 = por %p261, %p262
    %s264 = ssub.s32 %s26, %s38
    %p265 = scmp.eq.s32.totalorder %s264, 0
    %s267 = sadd.s32 %s266, 1
    %s268 = scalar_select %p265, %s266, %s267
    %p271 = pneg %p265
    %p272 = scmp.eq.s32.totalorder %s19, 1
    %p273 = por %p271, %p272
    %p274 = scmp.ne.s32.totalorder %s266, %s269
    %p275 = scmp.eq.s32.totalorder %s19, 0
    %p276 = por %p274, %p275
    %p277 = scmp.ne.s32.totalorder %s266, %s269
    %p278 = scmp.eq.s32.totalorder %s24, 1
    %p279 = por %p277, %p278
    %p280 = scmp.ne.s32.totalorder %s269, %s270
    %p281 = scmp.eq.s32.totalorder %s24, 0
    %p282 = por %p280, %p281
    %p283 = scmp.ne.s32.totalorder %s269, %s270
    %p284 = scmp.eq.s32.totalorder %s25, 1
    %p285 = por %p283, %p284
    %p287 = scmp.ne.s32.totalorder %s270, %s286
    %p288 = scmp.eq.s32.totalorder %s25, 0
    %p289 = por %p287, %p288
    %s290 = ssub.s32 %s26, %s38
    %p291 = scmp.eq.s32.totalorder %s290, 0
    %s293 = sadd.s32 %s292, 1
    %s294 = scalar_select %p291, %s292, %s293
    %p297 = pneg %p291
    %p298 = scmp.eq.s32.totalorder %s19, 1
    %p299 = por %p297, %p298
    %p300 = scmp.ne.s32.totalorder %s292, %s295
    %p301 = scmp.eq.s32.totalorder %s19, 0
    %p302 = por %p300, %p301
    %p303 = scmp.ne.s32.totalorder %s292, %s295
    %p304 = scmp.eq.s32.totalorder %s24, 1
    %p305 = por %p303, %p304
    %p306 = scmp.ne.s32.totalorder %s295, %s296
    %p307 = scmp.eq.s32.totalorder %s24, 0
    %p308 = por %p306, %p307
    %p309 = scmp.ne.s32.totalorder %s295, %s296
    %p310 = scmp.eq.s32.totalorder %s25, 1
    %p311 = por %p309, %p310
    %p313 = scmp.ne.s32.totalorder %s296, %s312
    %p314 = scmp.eq.s32.totalorder %s25, 0
    %p315 = por %p313, %p314
    %s316 = ssub.s32 %s26, %s38
    %p317 = scmp.eq.s32.totalorder %s316, 0
    %s319 = sadd.s32 %s318, 1
    %s320 = scalar_select %p317, %s318, %s319
    %p323 = pneg %p317
    %p324 = scmp.eq.s32.totalorder %s19, 1
    %p325 = por %p323, %p324
    %p326 = scmp.ne.s32.totalorder %s318, %s321
    %p327 = scmp.eq.s32.totalorder %s19, 0
    %p328 = por %p326, %p327
    %p329 = scmp.ne.s32.totalorder %s318, %s321
    %p330 = scmp.eq.s32.totalorder %s24, 1
    %p331 = por %p329, %p330
    %p332 = scmp.ne.s32.totalorder %s321, %s322
    %p333 = scmp.eq.s32.totalorder %s24, 0
    %p334 = por %p332, %p333
    %p335 = scmp.ne.s32.totalorder %s321, %s322
    %p336 = scmp.eq.s32.totalorder %s25, 1
    %p337 = por %p335, %p336
    %p339 = scmp.ne.s32.totalorder %s322, %s338
    %p340 = scmp.eq.s32.totalorder %s25, 0
    %p341 = por %p339, %p340
    %s342 = ssub.s32 %s26, %s38
    %p343 = scmp.eq.s32.totalorder %s342, 0
    %s345 = sadd.s32 %s344, 1
    %s346 = scalar_select %p343, %s344, %s345
    %p349 = pneg %p343
    %p350 = scmp.eq.s32.totalorder %s19, 1
    %p351 = por %p349, %p350
    %p352 = scmp.ne.s32.totalorder %s344, %s347
    %p353 = scmp.eq.s32.totalorder %s19, 0
    %p354 = por %p352, %p353
    %p355 = scmp.ne.s32.totalorder %s344, %s347
    %p356 = scmp.eq.s32.totalorder %s24, 1
    %p357 = por %p355, %p356
    %p358 = scmp.ne.s32.totalorder %s347, %s348
    %p359 = scmp.eq.s32.totalorder %s24, 0
    %p360 = por %p358, %p359
    %p361 = scmp.ne.s32.totalorder %s347, %s348
    %p362 = scmp.eq.s32.totalorder %s25, 1
    %p363 = por %p361, %p362
    %p365 = scmp.ne.s32.totalorder %s348, %s364
    %p366 = scmp.eq.s32.totalorder %s25, 0
    %p367 = por %p365, %p366
    %p368 = scmp.le.s32.totalorder 1, %s19
    %p369 = scmp.lt.s32.totalorder %s19, 3
    %p370 = pnand %p368, %p369
    %p371 = pneg %p370
    // Predicated region
    $region9: #{hybrid_loss.1} parent=5 // pred_check
      _
    $region10: #{hybrid_loss.1} parent=5 // pred_check_branch
      %373 = sbr.rel (%p370) target = $region12
    $region11: #{hybrid_loss.1} parent=5 // pred_region
      %s374 = ssub.s32 %s19, 1
      // Predicated region
      $region13: #{hybrid_loss.1} parent=11 // pred_check
        %p375 = pneg %p112
      $region14: #{hybrid_loss.1} parent=11 // pred_check_branch
        %377 = sbr.rel (%p375) target = $region16
      $region15: #{hybrid_loss.1} parent=11 // pred_region
        _
      $region16: #{hybrid_loss.1} parent=11 // pred_fallthru
        _
      // Predicated region
      $region17: #{hybrid_loss.1} parent=11 // pred_check
        %p378 = pneg %p193
      $region18: #{hybrid_loss.1} parent=11 // pred_check_branch
        %380 = sbr.rel (%p378) target = $region20
      $region19: #{hybrid_loss.1} parent=11 // pred_region
        _
      $region20: #{hybrid_loss.1} parent=11 // pred_fallthru
        _
      // Predicated region
      $region21: #{hybrid_loss.1} parent=11 // pred_check
        %p381 = pneg %p214
      $region22: #{hybrid_loss.1} parent=11 // pred_check_branch
        %383 = sbr.rel (%p381) target = $region24
      $region23: #{hybrid_loss.1} parent=11 // pred_region
        _
      $region24: #{hybrid_loss.1} parent=11 // pred_fallthru
        _
      // Predicated region
      $region25: #{hybrid_loss.1} parent=11 // pred_check
        %p384 = pneg %p235
      $region26: #{hybrid_loss.1} parent=11 // pred_check_branch
        %386 = sbr.rel (%p384) target = $region28
      $region27: #{hybrid_loss.1} parent=11 // pred_region
        _
      $region28: #{hybrid_loss.1} parent=11 // pred_fallthru
        _
      // Predicated region
      $region29: #{hybrid_loss.1} parent=11 // pred_check
        %p387 = pneg %p256
      $region30: #{hybrid_loss.1} parent=11 // pred_check_branch
        %389 = sbr.rel (%p387) target = $region32
      $region31: #{hybrid_loss.1} parent=11 // pred_region
        _
      $region32: #{hybrid_loss.1} parent=11 // pred_fallthru
        _
    $region12: #{hybrid_loss.1} parent=5 // pred_fallthru
      _
    %p390 = scmp.lt.s32.totalorder %s19, 2
    // Predicated region
    $region33: #{hybrid_loss.1} parent=5 // pred_check
      %p391 = pneg %p390
    $region34: #{hybrid_loss.1} parent=5 // pred_check_branch
      %393 = sbr.rel (%p391) target = $region36
    $region35: #{hybrid_loss.1} parent=5 // pred_region
      // Predicated region
      $region37: #{hybrid_loss.1} parent=35 // pred_check
        %p394 = pneg %p55
      $region38: #{hybrid_loss.1} parent=35 // pred_check_branch
        %396 = sbr.rel (%p394) target = $region40
      $region39: #{hybrid_loss.1} parent=35 // pred_region
        %s397 = smul.u32 %s26, 2
        %s398 = sadd.s32 %s397, %s27
        %s399 = smul.u32 2, %s398
        %p400 = scmp.lt.s32.totalorder %s399, 3
        %s401 = scalar_select %p400, %s399, 3
        %s402 = smul.addr %s401, 4
        %s403 = scalar_lea.vmem %s0, %s402
        %s404 = smul.u32 %s26, 2
        %s405 = sadd.s32 %s404, %s27
        %s406 = smul.u32 2, %s405
      $region40: #{hybrid_loss.1} parent=35 // pred_fallthru
        _
      // Predicated region
      $region41: #{hybrid_loss.1} parent=35 // pred_check
        %p407 = pneg %p85
      $region42: #{hybrid_loss.1} parent=35 // pred_check_branch
        %409 = sbr.rel (%p407) target = $region44
      $region43: #{hybrid_loss.1} parent=35 // pred_region
        %s410 = smul.u32 %s26, 2
        %s411 = sadd.s32 %s410, %s27
        %s412 = smul.u32 2, %s411
        %p413 = scmp.lt.s32.totalorder %s412, 3
        %s414 = scalar_select %p413, %s412, 3
        %s415 = smul.addr %s414, 4
        %s416 = scalar_lea.vmem %s1, %s415
        %s417 = smul.u32 %s26, 2
        %s418 = sadd.s32 %s417, %s27
        %s419 = smul.u32 2, %s418
      $region44: #{hybrid_loss.1} parent=35 // pred_fallthru
        _
      // Predicated region
      $region45: #{hybrid_loss.1} parent=35 // pred_check
        %p420 = pneg %p136
      $region46: #{hybrid_loss.1} parent=35 // pred_check_branch
        %422 = sbr.rel (%p420) target = $region48
      $region47: #{hybrid_loss.1} parent=35 // pred_region
        %s423 = smul.u32 %s26, 2
        %s424 = sadd.s32 %s423, %s27
        %s425 = smul.u32 2, %s424
        %p426 = scmp.lt.s32.totalorder %s425, 3
        %s427 = scalar_select %p426, %s425, 3
        %s428 = smul.addr %s427, 4
        %s429 = scalar_lea.vmem %s3, %s428
        %s430 = smul.u32 %s26, 2
        %s431 = sadd.s32 %s430, %s27
        %s432 = smul.u32 2, %s431
      $region48: #{hybrid_loss.1} parent=35 // pred_fallthru
        _
      // Predicated region
      $region49: #{hybrid_loss.1} parent=35 // pred_check
        %p433 = pneg %p166
      $region50: #{hybrid_loss.1} parent=35 // pred_check_branch
        %435 = sbr.rel (%p433) target = $region52
      $region51: #{hybrid_loss.1} parent=35 // pred_region
        %s436 = smul.u32 %s26, 2
        %s437 = sadd.s32 %s436, %s27
        %s438 = smul.u32 2, %s437
        %p439 = scmp.lt.s32.totalorder %s438, 3
        %s440 = scalar_select %p439, %s438, 3
        %s441 = smul.addr %s440, 4
        %s442 = scalar_lea.vmem %s4, %s441
        %s443 = smul.u32 %s26, 2
        %s444 = sadd.s32 %s443, %s27
        %s445 = smul.u32 2, %s444
      $region52: #{hybrid_loss.1} parent=35 // pred_fallthru
        _
    $region36: #{hybrid_loss.1} parent=5 // pred_fallthru
      _
    %p446 = scmp.le.s32.totalorder 1, %s19
    %p447 = scmp.lt.s32.totalorder %s19, 3
    %p448 = pnand %p446, %p447
    %p449 = pneg %p448
    // Predicated region
    $region53: #{hybrid_loss.1} parent=5 // pred_check
      _
    $region54: #{hybrid_loss.1} parent=5 // pred_check_branch
      %451 = sbr.rel (%p448) target = $region56
    $region55: #{hybrid_loss.1} parent=5 // pred_region
      %s452 = ssub.s32 %s19, 1
      %s453 = smul.u32 %s28, 2
      %s454 = sadd.s32 %s453, %s29
      %s455 = smul.u32 2, %s454
      %p456 = scmp.lt.s32.totalorder %s455, 3
      %s457 = scalar_select %p456, %s455, 3
      %s458 = smul.addr %s457, 4
      %s459 = scalar_lea.vmem %s0, %s458
      %p460 = pneg %p61
      %p461 = pneg %p58
      %s462 = smul.u32 %s28, 2
      %s463 = sadd.s32 %s462, %s29
      %s464 = smul.u32 2, %s463
      %p465 = scmp.lt.s32.totalorder %s464, 3
      %s466 = scalar_select %p465, %s464, 3
      %s467 = smul.addr %s466, 4
      %s468 = scalar_lea.vmem %s1, %s467
      %p469 = pneg %p91
      %p470 = pneg %p88
      %p471 = pneg %p112
      %p472 = pneg %p109
      %s473 = smul.u32 %s28, 2
      %s474 = sadd.s32 %s473, %s29
      %s475 = smul.u32 2, %s474
      %p476 = scmp.lt.s32.totalorder %s475, 3
      %s477 = scalar_select %p476, %s475, 3
      %s478 = smul.addr %s477, 4
      %s479 = scalar_lea.vmem %s3, %s478
      %p480 = pneg %p142
      %p481 = pneg %p139
      %s482 = smul.u32 %s28, 2
      %s483 = sadd.s32 %s482, %s29
      %s484 = smul.u32 2, %s483
      %p485 = scmp.lt.s32.totalorder %s484, 3
      %s486 = scalar_select %p485, %s484, 3
      %s487 = smul.addr %s486, 4
      %s488 = scalar_lea.vmem %s4, %s487
      %p489 = pneg %p172
      %p490 = pneg %p169
      %p491 = pneg %p193
      %p492 = pneg %p190
      %p493 = pneg %p214
      %p494 = pneg %p211
      %p495 = pneg %p235
      %p496 = pneg %p232
      %p497 = pneg %p256
      %p498 = pneg %p253
      %p499 = pneg %p282
      %p500 = pneg %p279
      %p501 = scmp.lt.s32.totalorder %s28, 0
      %s502 = scalar_select %p501, %s28, 0
      %s503 = scalar_lea.vmem %s9, %s502
      %p504 = pneg %p308
      %p505 = pneg %p305
      %p506 = scmp.lt.s32.totalorder %s28, 0
      %s507 = scalar_select %p506, %s28, 0
      %s508 = scalar_lea.vmem %s10, %s507
      %p509 = pneg %p334
      %p510 = pneg %p331
      %p511 = scmp.lt.s32.totalorder %s28, 0
      %s512 = scalar_select %p511, %s28, 0
      %s513 = scalar_lea.vmem %s11, %s512
      %p514 = pneg %p360
      %p515 = pneg %p357
      %p516 = scmp.lt.s32.totalorder %s28, 0
      %s517 = scalar_select %p516, %s28, 0
      %s518 = scalar_lea.vmem %s12, %s517
      %s519 = smul.u32 %s28, 2
      %s520 = sadd.s32 %s519, %s29
      %s521 = smul.u32 2, %s520
      %p522 = scmp.lt.s32.totalorder %s521, 3
      %s523 = scalar_select %p522, %s521, 3
      %s524 = smul.addr %s523, 4
      %s525 = scalar_lea.vmem %s0, %s524
      %s526 = smul.u32 %s28, 2
      %s527 = sadd.s32 %s526, %s29
      %s528 = smul.u32 2, %s527
      %s529 = smul.u32 %s28, 2
      %s530 = sadd.s32 %s529, %s29
      %s531 = smul.u32 2, %s530
      %p532 = scmp.lt.s32.totalorder %s531, 3
      %s533 = scalar_select %p532, %s531, 3
      %s534 = smul.addr %s533, 4
      %s535 = scalar_lea.vmem %s1, %s534
      %s536 = smul.u32 %s28, 2
      %s537 = sadd.s32 %s536, %s29
      %s538 = smul.u32 2, %s537
      %s539 = smul.u32 %s28, 2
      %s540 = sadd.s32 %s539, %s29
      %s541 = smul.u32 2, %s540
      %p542 = scmp.lt.s32.totalorder %s541, 3
      %s543 = scalar_select %p542, %s541, 3
      %s544 = smul.addr %s543, 4
      %s545 = scalar_lea.vmem %s3, %s544
      %s546 = smul.u32 %s28, 2
      %s547 = sadd.s32 %s546, %s29
      %s548 = smul.u32 2, %s547
      %s549 = smul.u32 %s28, 2
      %s550 = sadd.s32 %s549, %s29
      %s551 = smul.u32 2, %s550
      %p552 = scmp.lt.s32.totalorder %s551, 3
      %s553 = scalar_select %p552, %s551, 3
      %s554 = smul.addr %s553, 4
      %s555 = scalar_lea.vmem %s4, %s554
      %s556 = smul.u32 %s28, 2
      %s557 = sadd.s32 %s556, %s29
      %s558 = smul.u32 2, %s557
      %p559 = scmp.lt.s32.totalorder %s28, 0
      %s560 = scalar_select %p559, %s28, 0
      %s561 = scalar_lea.vmem %s9, %s560
      %p562 = scmp.lt.s32.totalorder %s28, 0
      %s563 = scalar_select %p562, %s28, 0
      %s564 = scalar_lea.vmem %s10, %s563
      %p565 = scmp.lt.s32.totalorder %s28, 0
      %s566 = scalar_select %p565, %s28, 0
      %s567 = scalar_lea.vmem %s11, %s566
      %p568 = scmp.lt.s32.totalorder %s28, 0
      %s569 = scalar_select %p568, %s28, 0
      %s570 = scalar_lea.vmem %s12, %s569
      %p571 = scmp.eq.s32.totalorder %s29, 0
      // Predicated region
      $region57: #{hybrid_loss.1} parent=55 // pred_check
        %p572 = pneg %p571
      $region58: #{hybrid_loss.1} parent=55 // pred_check_branch
        %574 = sbr.rel (%p572) target = $region60
      $region59: #{hybrid_loss.1} parent=55 // pred_region
        %575 = vst [vmem:[%s561] sm:$0x1] 0.0
        %576 = vst [vmem:[%s564] sm:$0x1] 0.0
      $region60: #{hybrid_loss.1} parent=55 // pred_fallthru
        _
      %v577 = vld [vmem:[%s2] sm:$0xff]
      %v578 = vld [vmem:[%s2 + $0x8] sm:$0xff]
      %v579 = vld [vmem:[%s2 + $0x10] sm:$0xff]
      %v580 = vld [vmem:[%s2 + $0x18] sm:$0xff]
      %v581 = vld [vmem:[%s2 + $0x20] sm:$0xff]
      %v582 = vld [vmem:[%s2 + $0x28] sm:$0xff]
      %v583 = vld [vmem:[%s2 + $0x30] sm:$0xff]
      %v584 = vld [vmem:[%s2 + $0x38] sm:$0xff]
      %v585 = vld [vmem:[%s2 + $0x40] sm:$0xff]
      %v586 = vld [vmem:[%s2 + $0x48] sm:$0xff]
      %v587 = vld [vmem:[%s2 + $0x50] sm:$0xff]
      %v588 = vld [vmem:[%s2 + $0x58] sm:$0xff]
      %v589 = vld [vmem:[%s2 + $0x60] sm:$0xff]
      %v590 = vld [vmem:[%s2 + $0x68] sm:$0xff]
      %v591 = vld [vmem:[%s2 + $0x70] sm:$0xff]
      %v592 = vld [vmem:[%s2 + $0x78] sm:$0xff]
      %v593 = vld [vmem:[%s525] sm:$0xf]
      %v594 = vld [vmem:[%s525 + $0x4] sm:$0xf]
      %v597 = vunpack.c.l.b16 %v593
      %v598 = vunpack.c.l.b16 %v594
      %v599 = vpack.c.b16 %v598, %v597
      %v617 = vunpack.c.l.b16 %v577
      %v618 = vunpack.c.h.b16 %v577
      %v619 = vunpack.c.l.b16 %v578
      %v620 = vunpack.c.h.b16 %v578
      %v621 = vunpack.c.l.b16 %v579
      %v622 = vunpack.c.h.b16 %v579
      %v623 = vunpack.c.l.b16 %v580
      %v624 = vunpack.c.h.b16 %v580
      %v625 = vunpack.c.l.b16 %v581
      %v626 = vunpack.c.h.b16 %v581
      %v627 = vunpack.c.l.b16 %v582
      %v628 = vunpack.c.h.b16 %v582
      %v629 = vunpack.c.l.b16 %v583
      %v630 = vunpack.c.h.b16 %v583
      %v631 = vunpack.c.l.b16 %v584
      %v632 = vunpack.c.h.b16 %v584
      %v633 = vunpack.c.l.b16 %v585
      %v634 = vunpack.c.h.b16 %v585
      %v635 = vunpack.c.l.b16 %v586
      %v636 = vunpack.c.h.b16 %v586
      %v637 = vunpack.c.l.b16 %v587
      %v638 = vunpack.c.h.b16 %v587
      %v639 = vunpack.c.l.b16 %v588
      %v640 = vunpack.c.h.b16 %v588
      %v641 = vunpack.c.l.b16 %v589
      %v642 = vunpack.c.h.b16 %v589
      %v643 = vunpack.c.l.b16 %v590
      %v644 = vunpack.c.h.b16 %v590
      %v645 = vunpack.c.l.b16 %v591
      %v646 = vunpack.c.h.b16 %v591
      %v647 = vunpack.c.l.b16 %v592
      %v648 = vunpack.c.h.b16 %v592
      %v649 = vpack.c.b16 %v619, %v617
      %v650 = vpack.c.b16 %v620, %v618
      %v651 = vpack.c.b16 %v623, %v621
      %v652 = vpack.c.b16 %v624, %v622
      %v653 = vpack.c.b16 %v627, %v625
      %v654 = vpack.c.b16 %v628, %v626
      %v655 = vpack.c.b16 %v631, %v629
      %v656 = vpack.c.b16 %v632, %v630
      %v657 = vpack.c.b16 %v635, %v633
      %v658 = vpack.c.b16 %v636, %v634
      %v659 = vpack.c.b16 %v639, %v637
      %v660 = vpack.c.b16 %v640, %v638
      %v661 = vpack.c.b16 %v643, %v641
      %v662 = vpack.c.b16 %v644, %v642
      %v663 = vpack.c.b16 %v647, %v645
      %v664 = vpack.c.b16 %v648, %v646
      %681 = vmatpush.bf16.msra.mxu0 %v663
      %682 = vmatpush.bf16.msra.mxu0 %v661
      %683 = vmatpush.bf16.msra.mxu0 %v659
      %684 = vmatpush.bf16.msra.mxu0 %v657
      %685 = vmatpush.bf16.msra.mxu0 %v655
      %686 = vmatpush.bf16.msra.mxu0 %v653
      %687 = vmatpush.bf16.msra.mxu0 %v651
      %688 = vmatpush.bf16.msra.mxu0 %v649
      %689 = vmatmul.bf16.gmra.mxu0 %v599
      %v690 = vpop.f32.mrf.mxu0
      %v691 = vadd.f32 0.0, %v690
      %v692 = vpop.f32.mrf.mxu0
      %v693 = vadd.f32 0.0, %v692
      %694 = vdwg.mxu0
      %695 = vmatpush.bf16.msra.mxu0 %v664
      %696 = vmatpush.bf16.msra.mxu0 %v662
      %697 = vmatpush.bf16.msra.mxu0 %v660
      %698 = vmatpush.bf16.msra.mxu0 %v658
      %699 = vmatpush.bf16.msra.mxu0 %v656
      %700 = vmatpush.bf16.msra.mxu0 %v654
      %701 = vmatpush.bf16.msra.mxu0 %v652
      %702 = vmatpush.bf16.msra.mxu0 %v650
      %703 = vmatmul.bf16.gmra.mxu0 %v599
      %v704 = vpop.f32.mrf.mxu0
      %v705 = vadd.f32 0.0, %v704
      %v706 = vpop.f32.mrf.mxu0
      %v707 = vadd.f32 0.0, %v706
      %708 = vdwg.mxu0
      %v709 = vld [vmem:[%s535] sm:$0xf]
      %v710 = vld [vmem:[%s535 + $0x4] sm:$0xf]
      %v713 = vunpack.c.l.b16 %v709
      %v714 = vunpack.c.l.b16 %v710
      %v715 = vpack.c.b16 %v714, %v713
      %717 = vmatpush.bf16.msra.mxu0 %v663
      %718 = vmatpush.bf16.msra.mxu0 %v661
      %719 = vmatpush.bf16.msra.mxu0 %v659
      %720 = vmatpush.bf16.msra.mxu0 %v657
      %721 = vmatpush.bf16.msra.mxu0 %v655
      %722 = vmatpush.bf16.msra.mxu0 %v653
      %723 = vmatpush.bf16.msra.mxu0 %v651
      %724 = vmatpush.bf16.msra.mxu0 %v649
      %725 = vmatmul.bf16.gmra.mxu0 %v715
      %v726 = vpop.f32.mrf.mxu0
      %v727 = vadd.f32 0.0, %v726
      %v728 = vpop.f32.mrf.mxu0
      %v729 = vadd.f32 0.0, %v728
      %730 = vdwg.mxu0
      %731 = vmatpush.bf16.msra.mxu0 %v664
      %732 = vmatpush.bf16.msra.mxu0 %v662
      %733 = vmatpush.bf16.msra.mxu0 %v660
      %734 = vmatpush.bf16.msra.mxu0 %v658
      %735 = vmatpush.bf16.msra.mxu0 %v656
      %736 = vmatpush.bf16.msra.mxu0 %v654
      %737 = vmatpush.bf16.msra.mxu0 %v652
      %738 = vmatpush.bf16.msra.mxu0 %v650
      %739 = vmatmul.bf16.gmra.mxu0 %v715
      %v740 = vpop.f32.mrf.mxu0
      %v741 = vadd.f32 0.0, %v740
      %v742 = vpop.f32.mrf.mxu0
      %v743 = vadd.f32 0.0, %v742
      %744 = vdwg.mxu0
      %v745 = vmul.f32 %v691, %v691
      %v746 = vmul.f32 %v705, %v705
      %v747 = vmul.f32 %v693, %v693
      %v748 = vmul.f32 %v707, %v707
      %v749 = vmul.f32 %v727, %v727
      %v750 = vmul.f32 %v741, %v741
      %v751 = vmul.f32 %v729, %v729
      %v752 = vmul.f32 %v743, %v743
      %v753 = vadd.f32 %v745, %v746
      %v754 = vadd.f32 %v747, %v748
      %v755 = vadd.f32 %v749, %v750
      %v756 = vadd.f32 %v751, %v752
      %v757 = vsub.f32 %v755, %v753
      %v758 = vsub.f32 %v756, %v754
      %v759 = vand.u32 2147483647, %v757
      %v760 = vand.u32 2147483647, %v758
      %v761 = vadd.f32 %v753, 1e-07
      %v762 = vadd.f32 %v754, 1e-07
      %v763 = vadd.f32 %v755, 1e-07
      %v764 = vadd.f32 %v756, 1e-07
      %v765 = vrcp.pop %v763
      %v766 = vmul.f32 %v763, %v765
      %v767 = vsub.f32 1.0, %v766
      %v768 = vmul.f32 %v765, %v767
      %v769 = vadd.f32 %v765, %v768
      %vm770 = vweird.f32 %v763
      %vm771 = vweird.f32 %v765
      %vm772 = vmor %vm770, %vm771
      %v773 = vsel %vm772, %v765, %v769
      %v774 = vand.u32 2147483647, %v763
      %vm775 = vcmp.eq.f32.partialorder %v774, 8.507059e+37
      %v776 = vand.u32 %v763, 2147483648
      %v777 = vor.u32 1.1754944e-38, %v776
      %v778 = vsel %vm775, %v777, %v773
      %v779 = vmul.f32 %v761, %v778
      %v780 = vrcp.pop %v764
      %v781 = vmul.f32 %v764, %v780
      %v782 = vsub.f32 1.0, %v781
      %v783 = vmul.f32 %v780, %v782
      %v784 = vadd.f32 %v780, %v783
      %vm785 = vweird.f32 %v764
      %vm786 = vweird.f32 %v780
      %vm787 = vmor %vm785, %vm786
      %v788 = vsel %vm787, %v780, %v784
      %v789 = vand.u32 2147483647, %v764
      %vm790 = vcmp.eq.f32.partialorder %v789, 8.507059e+37
      %v791 = vand.u32 %v764, 2147483648
      %v792 = vor.u32 1.1754944e-38, %v791
      %v793 = vsel %vm790, %v792, %v788
      %v794 = vmul.f32 %v762, %v793
      %v795 = vlog2.pop %v779
      %v796 = vmul.f32 %v795, 0.6931472
      %v797 = vlog2.pop %v794
      %v798 = vmul.f32 %v797, 0.6931472
      %v799 = vrcp.pop 0.6931472
      %v800 = vmul.f32 0.6931472, %v799
      %v801 = vsub.f32 1.0, %v800
      %v802 = vmul.f32 %v799, %v801
      %v803 = vadd.f32 %v799, %v802
      %vm804 = vweird.f32 %v799
      %v805 = vsel %vm804, %v799, %v803
      %v806 = vmul.f32 %v796, %v805
      %v807 = vmul.f32 %v798, %v805
      %v808 = vand.u32 2147483647, %v806
      %v809 = vand.u32 2147483647, %v807
      %v810 = vadd.f32 %v759, %v808
      %v811 = vadd.f32 %v760, %v809
      %v812 = vld [vmem:[%s561] sm:$0x1]
      %v813 = vadd.f32 %v810, %v811
      %v814 = vrot.slane %v813, 4
      %v815 = vadd.f32 %v813, %v814
      %v816 = vrot.slane %v815, 2
      %v817 = vadd.f32 %v815, %v816
      %v818 = vrot.slane %v817, 1
      %v819 = vadd.f32 %v817, %v818
      %v820 = vadd.f32 %v812, %v819
      %821 = vst [vmem:[%s561] sm:$0x1] %v820
      %v822 = vld [vmem:[%s5] sm:$0xff]
      %v823 = vld [vmem:[%s5 + $0x8] sm:$0xff]
      %v824 = vld [vmem:[%s5 + $0x10] sm:$0xff]
      %v825 = vld [vmem:[%s5 + $0x18] sm:$0xff]
      %v826 = vld [vmem:[%s5 + $0x20] sm:$0xff]
      %v827 = vld [vmem:[%s5 + $0x28] sm:$0xff]
      %v828 = vld [vmem:[%s5 + $0x30] sm:$0xff]
      %v829 = vld [vmem:[%s5 + $0x38] sm:$0xff]
      %v830 = vld [vmem:[%s5 + $0x40] sm:$0xff]
      %v831 = vld [vmem:[%s5 + $0x48] sm:$0xff]
      %v832 = vld [vmem:[%s5 + $0x50] sm:$0xff]
      %v833 = vld [vmem:[%s5 + $0x58] sm:$0xff]
      %v834 = vld [vmem:[%s5 + $0x60] sm:$0xff]
      %v835 = vld [vmem:[%s5 + $0x68] sm:$0xff]
      %v836 = vld [vmem:[%s5 + $0x70] sm:$0xff]
      %v837 = vld [vmem:[%s5 + $0x78] sm:$0xff]
      %v838 = vld [vmem:[%s545] sm:$0xf]
      %v839 = vld [vmem:[%s545 + $0x4] sm:$0xf]
      %v842 = vunpack.c.l.b16 %v838
      %v843 = vunpack.c.l.b16 %v839
      %v844 = vpack.c.b16 %v843, %v842
      %v862 = vunpack.c.l.b16 %v822
      %v863 = vunpack.c.h.b16 %v822
      %v864 = vunpack.c.l.b16 %v823
      %v865 = vunpack.c.h.b16 %v823
      %v866 = vunpack.c.l.b16 %v824
      %v867 = vunpack.c.h.b16 %v824
      %v868 = vunpack.c.l.b16 %v825
      %v869 = vunpack.c.h.b16 %v825
      %v870 = vunpack.c.l.b16 %v826
      %v871 = vunpack.c.h.b16 %v826
      %v872 = vunpack.c.l.b16 %v827
      %v873 = vunpack.c.h.b16 %v827
      %v874 = vunpack.c.l.b16 %v828
      %v875 = vunpack.c.h.b16 %v828
      %v876 = vunpack.c.l.b16 %v829
      %v877 = vunpack.c.h.b16 %v829
      %v878 = vunpack.c.l.b16 %v830
      %v879 = vunpack.c.h.b16 %v830
      %v880 = vunpack.c.l.b16 %v831
      %v881 = vunpack.c.h.b16 %v831
      %v882 = vunpack.c.l.b16 %v832
      %v883 = vunpack.c.h.b16 %v832
      %v884 = vunpack.c.l.b16 %v833
      %v885 = vunpack.c.h.b16 %v833
      %v886 = vunpack.c.l.b16 %v834
      %v887 = vunpack.c.h.b16 %v834
      %v888 = vunpack.c.l.b16 %v835
      %v889 = vunpack.c.h.b16 %v835
      %v890 = vunpack.c.l.b16 %v836
      %v891 = vunpack.c.h.b16 %v836
      %v892 = vunpack.c.l.b16 %v837
      %v893 = vunpack.c.h.b16 %v837
      %v894 = vpack.c.b16 %v864, %v862
      %v895 = vpack.c.b16 %v865, %v863
      %v896 = vpack.c.b16 %v868, %v866
      %v897 = vpack.c.b16 %v869, %v867
      %v898 = vpack.c.b16 %v872, %v870
      %v899 = vpack.c.b16 %v873, %v871
      %v900 = vpack.c.b16 %v876, %v874
      %v901 = vpack.c.b16 %v877, %v875
      %v902 = vpack.c.b16 %v880, %v878
      %v903 = vpack.c.b16 %v881, %v879
      %v904 = vpack.c.b16 %v884, %v882
      %v905 = vpack.c.b16 %v885, %v883
      %v906 = vpack.c.b16 %v888, %v886
      %v907 = vpack.c.b16 %v889, %v887
      %v908 = vpack.c.b16 %v892, %v890
      %v909 = vpack.c.b16 %v893, %v891
      %926 = vmatpush.bf16.msra.mxu0 %v908
      %927 = vmatpush.bf16.msra.mxu0 %v906
      %928 = vmatpush.bf16.msra.mxu0 %v904
      %929 = vmatpush.bf16.msra.mxu0 %v902
      %930 = vmatpush.bf16.msra.mxu0 %v900
      %931 = vmatpush.bf16.msra.mxu0 %v898
      %932 = vmatpush.bf16.msra.mxu0 %v896
      %933 = vmatpush.bf16.msra.mxu0 %v894
      %934 = vmatmul.bf16.gmra.mxu0 %v844
      %v935 = vpop.f32.mrf.mxu0
      %v936 = vadd.f32 0.0, %v935
      %v937 = vpop.f32.mrf.mxu0
      %v938 = vadd.f32 0.0, %v937
      %939 = vdwg.mxu0
      %940 = vmatpush.bf16.msra.mxu0 %v909
      %941 = vmatpush.bf16.msra.mxu0 %v907
      %942 = vmatpush.bf16.msra.mxu0 %v905
      %943 = vmatpush.bf16.msra.mxu0 %v903
      %944 = vmatpush.bf16.msra.mxu0 %v901
      %945 = vmatpush.bf16.msra.mxu0 %v899
      %946 = vmatpush.bf16.msra.mxu0 %v897
      %947 = vmatpush.bf16.msra.mxu0 %v895
      %948 = vmatmul.bf16.gmra.mxu0 %v844
      %v949 = vpop.f32.mrf.mxu0
      %v950 = vadd.f32 0.0, %v949
      %v951 = vpop.f32.mrf.mxu0
      %v952 = vadd.f32 0.0, %v951
      %953 = vdwg.mxu0
      %v954 = vld [vmem:[%s555] sm:$0xf]
      %v955 = vld [vmem:[%s555 + $0x4] sm:$0xf]
      %v958 = vunpack.c.l.b16 %v954
      %v959 = vunpack.c.l.b16 %v955
      %v960 = vpack.c.b16 %v959, %v958
      %962 = vmatpush.bf16.msra.mxu0 %v908
      %963 = vmatpush.bf16.msra.mxu0 %v906
      %964 = vmatpush.bf16.msra.mxu0 %v904
      %965 = vmatpush.bf16.msra.mxu0 %v902
      %966 = vmatpush.bf16.msra.mxu0 %v900
      %967 = vmatpush.bf16.msra.mxu0 %v898
      %968 = vmatpush.bf16.msra.mxu0 %v896
      %969 = vmatpush.bf16.msra.mxu0 %v894
      %970 = vmatmul.bf16.gmra.mxu0 %v960
      %v971 = vpop.f32.mrf.mxu0
      %v972 = vadd.f32 0.0, %v971
      %v973 = vpop.f32.mrf.mxu0
      %v974 = vadd.f32 0.0, %v973
      %975 = vdwg.mxu0
      %976 = vmatpush.bf16.msra.mxu0 %v909
      %977 = vmatpush.bf16.msra.mxu0 %v907
      %978 = vmatpush.bf16.msra.mxu0 %v905
      %979 = vmatpush.bf16.msra.mxu0 %v903
      %980 = vmatpush.bf16.msra.mxu0 %v901
      %981 = vmatpush.bf16.msra.mxu0 %v899
      %982 = vmatpush.bf16.msra.mxu0 %v897
      %983 = vmatpush.bf16.msra.mxu0 %v895
      %984 = vmatmul.bf16.gmra.mxu0 %v960
      %v985 = vpop.f32.mrf.mxu0
      %v986 = vadd.f32 0.0, %v985
      %v987 = vpop.f32.mrf.mxu0
      %v988 = vadd.f32 0.0, %v987
      %989 = vdwg.mxu0
      %v990 = vmul.f32 %v936, %v936
      %v991 = vmul.f32 %v950, %v950
      %v992 = vmul.f32 %v938, %v938
      %v993 = vmul.f32 %v952, %v952
      %v994 = vmul.f32 %v972, %v972
      %v995 = vmul.f32 %v986, %v986
      %v996 = vmul.f32 %v974, %v974
      %v997 = vmul.f32 %v988, %v988
      %v998 = vadd.f32 %v990, %v991
      %v999 = vadd.f32 %v992, %v993
      %v1000 = vadd.f32 %v994, %v995
      %v1001 = vadd.f32 %v996, %v997
      %v1002 = vsub.f32 %v1000, %v998
      %v1003 = vsub.f32 %v1001, %v999
      %v1004 = vand.u32 2147483647, %v1002
      %v1005 = vand.u32 2147483647, %v1003
      %v1006 = vadd.f32 %v998, 1e-07
      %v1007 = vadd.f32 %v999, 1e-07
      %v1008 = vadd.f32 %v1000, 1e-07
      %v1009 = vadd.f32 %v1001, 1e-07
      %v1010 = vrcp.pop %v1008
      %v1011 = vmul.f32 %v1008, %v1010
      %v1012 = vsub.f32 1.0, %v1011
      %v1013 = vmul.f32 %v1010, %v1012
      %v1014 = vadd.f32 %v1010, %v1013
      %vm1015 = vweird.f32 %v1008
      %vm1016 = vweird.f32 %v1010
      %vm1017 = vmor %vm1015, %vm1016
      %v1018 = vsel %vm1017, %v1010, %v1014
      %v1019 = vand.u32 2147483647, %v1008
      %vm1020 = vcmp.eq.f32.partialorder %v1019, 8.507059e+37
      %v1021 = vand.u32 %v1008, 2147483648
      %v1022 = vor.u32 1.1754944e-38, %v1021
      %v1023 = vsel %vm1020, %v1022, %v1018
      %v1024 = vmul.f32 %v1006, %v1023
      %v1025 = vrcp.pop %v1009
      %v1026 = vmul.f32 %v1009, %v1025
      %v1027 = vsub.f32 1.0, %v1026
      %v1028 = vmul.f32 %v1025, %v1027
      %v1029 = vadd.f32 %v1025, %v1028
      %vm1030 = vweird.f32 %v1009
      %vm1031 = vweird.f32 %v1025
      %vm1032 = vmor %vm1030, %vm1031
      %v1033 = vsel %vm1032, %v1025, %v1029
      %v1034 = vand.u32 2147483647, %v1009
      %vm1035 = vcmp.eq.f32.partialorder %v1034, 8.507059e+37
      %v1036 = vand.u32 %v1009, 2147483648
      %v1037 = vor.u32 1.1754944e-38, %v1036
      %v1038 = vsel %vm1035, %v1037, %v1033
      %v1039 = vmul.f32 %v1007, %v1038
      %v1040 = vlog2.pop %v1024
      %v1041 = vmul.f32 %v1040, 0.6931472
      %v1042 = vlog2.pop %v1039
      %v1043 = vmul.f32 %v1042, 0.6931472
      %v1044 = vmul.f32 %v1041, %v805
      %v1045 = vmul.f32 %v1043, %v805
      %v1046 = vand.u32 2147483647, %v1044
      %v1047 = vand.u32 2147483647, %v1045
      %v1048 = vadd.f32 %v1004, %v1046
      %v1049 = vadd.f32 %v1005, %v1047
      %v1050 = vld [vmem:[%s564] sm:$0x1]
      %v1051 = vadd.f32 %v1048, %v1049
      %v1052 = vrot.slane %v1051, 4
      %v1053 = vadd.f32 %v1051, %v1052
      %v1054 = vrot.slane %v1053, 2
      %v1055 = vadd.f32 %v1053, %v1054
      %v1056 = vrot.slane %v1055, 1
      %v1057 = vadd.f32 %v1055, %v1056
      %v1058 = vadd.f32 %v1050, %v1057
      %1059 = vst [vmem:[%s564] sm:$0x1] %v1058
      %v1060 = vld [vmem:[%s6] sm:$0x3]
      %v1061 = vand.u32 2147483647, %v1060
      %vm1062 = vcmask 1041408
      %v1063 = vsel %vm1062, %v1061, 0.0
      %v1064 = vrot.slane %v1063, 4
      %v1065 = vadd.f32 %v1063, %v1064
      %v1066 = vrot.slane %v1065, 2
      %v1067 = vadd.f32 %v1065, %v1066
      %v1068 = vrot.slane %v1067, 1
      %v1069 = vadd.f32 %v1067, %v1068
      %v1070 = vmul.f32 %v1069, 0.005
      %v1071 = vld [vmem:[%s7] sm:$0x1]
      %v1072 = vand.u32 2147483647, %v1071
      %v1073 = vld [vmem:[%s8] sm:$0x1]
      %v1074 = vand.u32 2147483647, %v1073
      %v1075 = vadd.f32 %v1072, %v1074
      %v1076 = vmul.f32 %v1075, 0.1
      %1077 = vst [vmem:[%s567] sm:$0x1] %v1070
      %1078 = vst [vmem:[%s570] sm:$0x1] %v1076
      %p1079 = scmp.lt.s32.totalorder %s28, 0
      %s1080 = scalar_select %p1079, %s28, 0
      %s1081 = scalar_lea.vmem %s9, %s1080
      %p1082 = scmp.lt.s32.totalorder %s28, 0
      %s1083 = scalar_select %p1082, %s28, 0
      %s1084 = scalar_lea.vmem %s10, %s1083
      %p1085 = scmp.lt.s32.totalorder %s28, 0
      %s1086 = scalar_select %p1085, %s28, 0
      %s1087 = scalar_lea.vmem %s11, %s1086
      %p1088 = scmp.lt.s32.totalorder %s28, 0
      %s1089 = scalar_select %p1088, %s28, 0
      %s1090 = scalar_lea.vmem %s12, %s1089
      // Predicated region
      $region61: #{hybrid_loss.1} parent=55 // pred_check
        %p1091 = pneg %p279
      $region62: #{hybrid_loss.1} parent=55 // pred_check_branch
        %1093 = sbr.rel (%p1091) target = $region64
      $region63: #{hybrid_loss.1} parent=55 // pred_region
        _
      $region64: #{hybrid_loss.1} parent=55 // pred_fallthru
        _
      // Predicated region
      $region65: #{hybrid_loss.1} parent=55 // pred_check
        %p1094 = pneg %p305
      $region66: #{hybrid_loss.1} parent=55 // pred_check_branch
        %1096 = sbr.rel (%p1094) target = $region68
      $region67: #{hybrid_loss.1} parent=55 // pred_region
        _
      $region68: #{hybrid_loss.1} parent=55 // pred_fallthru
        _
      // Predicated region
      $region69: #{hybrid_loss.1} parent=55 // pred_check
        %p1097 = pneg %p331
      $region70: #{hybrid_loss.1} parent=55 // pred_check_branch
        %1099 = sbr.rel (%p1097) target = $region72
      $region71: #{hybrid_loss.1} parent=55 // pred_region
        _
      $region72: #{hybrid_loss.1} parent=55 // pred_fallthru
        _
      // Predicated region
      $region73: #{hybrid_loss.1} parent=55 // pred_check
        %p1100 = pneg %p357
      $region74: #{hybrid_loss.1} parent=55 // pred_check_branch
        %1102 = sbr.rel (%p1100) target = $region76
      $region75: #{hybrid_loss.1} parent=55 // pred_region
        _
      $region76: #{hybrid_loss.1} parent=55 // pred_fallthru
        _
      // Predicated region
      $region77: #{hybrid_loss.1} parent=55 // pred_check
        %p1103 = pneg %p279
      $region78: #{hybrid_loss.1} parent=55 // pred_check_branch
        %1105 = sbr.rel (%p1103) target = $region80
      $region79: #{hybrid_loss.1} parent=55 // pred_region
        %p1106 = scmp.lt.s32.totalorder %s28, 0
        %s1107 = scalar_select %p1106, %s28, 0
        %s1108 = scalar_lea.vmem %s9, %s1107
      $region80: #{hybrid_loss.1} parent=55 // pred_fallthru
        _
      // Predicated region
      $region81: #{hybrid_loss.1} parent=55 // pred_check
        %p1109 = pneg %p305
      $region82: #{hybrid_loss.1} parent=55 // pred_check_branch
        %1111 = sbr.rel (%p1109) target = $region84
      $region83: #{hybrid_loss.1} parent=55 // pred_region
        %p1112 = scmp.lt.s32.totalorder %s28, 0
        %s1113 = scalar_select %p1112, %s28, 0
        %s1114 = scalar_lea.vmem %s10, %s1113
      $region84: #{hybrid_loss.1} parent=55 // pred_fallthru
        _
      // Predicated region
      $region85: #{hybrid_loss.1} parent=55 // pred_check
        %p1115 = pneg %p331
      $region86: #{hybrid_loss.1} parent=55 // pred_check_branch
        %1117 = sbr.rel (%p1115) target = $region88
      $region87: #{hybrid_loss.1} parent=55 // pred_region
        %p1118 = scmp.lt.s32.totalorder %s28, 0
        %s1119 = scalar_select %p1118, %s28, 0
        %s1120 = scalar_lea.vmem %s11, %s1119
      $region88: #{hybrid_loss.1} parent=55 // pred_fallthru
        _
      // Predicated region
      $region89: #{hybrid_loss.1} parent=55 // pred_check
        %p1121 = pneg %p357
      $region90: #{hybrid_loss.1} parent=55 // pred_check_branch
        %1123 = sbr.rel (%p1121) target = $region92
      $region91: #{hybrid_loss.1} parent=55 // pred_region
        %p1124 = scmp.lt.s32.totalorder %s28, 0
        %s1125 = scalar_select %p1124, %s28, 0
        %s1126 = scalar_lea.vmem %s12, %s1125
      $region92: #{hybrid_loss.1} parent=55 // pred_fallthru
        _
    $region56: #{hybrid_loss.1} parent=5 // pred_fallthru
      _
    %p1127 = scmp.le.s32.totalorder 2, %s19
    // Predicated region
    $region93: #{hybrid_loss.1} parent=5 // pred_check
      %p1128 = pneg %p1127
    $region94: #{hybrid_loss.1} parent=5 // pred_check_branch
      %1130 = sbr.rel (%p1128) target = $region96
    $region95: #{hybrid_loss.1} parent=5 // pred_region
      %s1131 = ssub.s32 %s19, 2
    $region96: #{hybrid_loss.1} parent=5 // pred_fallthru
      _
  $region6: #{hybrid_loss.1} parent=0 // loop_footer
    %s23 = sadd.s32 1, %s19
  $region7: #{hybrid_loss.1} parent=0 // loop_footer_branch
    %18 = sbr.rel target = $region3
  $region8: #{hybrid_loss.1} parent=0 // loop_exit
    _

</llo_original>
